<compile_context>
chip_gen: v5e
topology: v5e:2x2
jax: 0.10.0
libtpu: 0.0.40
codegen_flags: <defaults>
</compile_context>

<pallas_src>
import functools

import jax
import jax.numpy as jnp
from jax import lax
from jax.experimental import pallas as pl
from jax.experimental.pallas import tpu as pltpu


def _round_up(x, m):
    return ((x + m - 1) // m) * m


def _pick_batch_tile(B_pad, H_pad, batch_tile):
    """Batch rows per grid tile.

    Default keeps a single tile (on one TensorCore the grid is a serial loop, so
    splitting batch only adds per-step overhead and shrinks the recurrent
    matmul), but caps the f32 hidden carry at ~64 KiB so the unrolled recurrence
    stays well inside the 256 KiB vreg file.  On v7x (2 TensorCores) pass
    batch_tile = ceil(B/2) explicitly so the "parallel" batch axis can shard
    across both cores.
    """
    if batch_tile is not None:
        bt = min(_round_up(batch_tile, 8), B_pad)
    else:
        carry_cap_rows = max(8, (64 * 1024 // (H_pad * 4)) // 8 * 8)
        bt = min(B_pad, carry_cap_rows)
    bt = max(8, bt - bt % 8)
    while B_pad % bt:          # largest multiple of 8 that divides B_pad
        bt -= 8
    return bt


def _pick_time_chunk(T, Bt, E_pad, H_pad, O_pad, weight_bytes, budget_bytes,
                     max_chunk=32):
    """Largest time chunk (divisor of T, capped) whose VMEM footprint fits the
    byte budget.  Bigger chunks mean fewer ~0.35us grid steps and a larger,
    more MXU-efficient hoisted x-projection; the explicit budget keeps the
    choice safe on v7x's 64 MiB/TC VMEM (half of v5e/v6e)."""
    def vmem_need(tc):
        return (2 * tc * Bt * E_pad * 2      # double-buffered bf16 emb chunks
                + 2 * tc * Bt * H_pad * 4    # ping/pong f32 x-proj buffers
                + Bt * H_pad * 4             # hidden-state carry
                + 2 * Bt * O_pad * 4         # output block
                + weight_bytes)
    best = 1
    for tc in range(1, min(T, max_chunk) + 1):
        if T % tc == 0 and vmem_need(tc) <= budget_bytes:
            best = tc
    return best


def rnn_fc_kernel(emb_ref, wih_ref, whh_ref, b_ref, wfc_ref, bfc_ref,
                  out_ref, h_ref, pre0_ref, pre1_ref):
    """One (batch-tile, pipeline-step) grid step of tanh-RNN + final Linear.

    The time axis is software-pipelined one chunk ahead: at grid step tc the
    kernel (a) runs the serial recurrence over the chunk whose input projection
    was hoisted at step tc-1, and (b) hoists the input projection of chunk tc.
    Both live in the same basic block and touch disjoint ping/pong buffers, so
    the scheduler can interleave the independent x-proj vmatmuls into the
    recurrence's MXU->tanh dependency stalls.  The time grid extent is
    therefore n_chunks + 1.

    emb_ref  : (1, Tc*Bt, E_pad) bf16  chunk tc's inputs (time-major, then batch)
    wih_ref  : (E_pad, H_pad)    bf16  W_ih^T (zero padded)
    whh_ref  : (H_pad, H_pad)    bf16  W_hh^T (zero padded)
    b_ref    : (1, H_pad)        f32   b_ih + b_hh
    wfc_ref  : (H_pad, O_pad)    bf16  W_fc^T (zero padded -> lane-dense output)
    bfc_ref  : (1, O_pad)        f32   b_fc
    out_ref  : (Bt, O_pad)       f32   fc(last hidden), written on the last step
    h_ref    : (Bt, H_pad)       f32   hidden-state carry across grid steps
    pre0/1   : (Tc*Bt, H_pad)    f32   ping/pong buffers for the hoisted x-proj
    """
    tc = pl.program_id(1)
    n_steps = pl.num_programs(1)          # == n_chunks + 1
    Bt, _ = h_ref.shape
    Tc = pre0_ref.shape[0] // Bt
    mxu_dtype = whh_ref.dtype

    # Interleave independent batch sub-chains through the serial recurrence so
    # chain A's tanh (EUP) overlaps chain B's h @ W_hh (MXU).  Only split when
    # each sub-tile stays sublane-aligned (multiple of 8 rows).
    n_chains = 2 if (Bt >= 16 and Bt % 16 == 0) else 1
    rpc = Bt // n_chains                   # rows per chain

    def x_proj(write_ref):
        # Hoisted input projection for chunk tc: one MXU-friendly
        # (Tc*Bt, E_pad) x (E_pad, H_pad) matmul, bias fused.  Independent of
        # the recurrence it shares a basic block with.
        write_ref[...] = (
            jnp.dot(emb_ref[0], wih_ref[...], preferred_element_type=jnp.float32)
            + b_ref[...]
        )

    def recur(read_ref):
        # Serial recurrence over the chunk hoisted at the previous grid step:
        # only h @ W_hh^T (+ add + tanh) is on the critical path.  bf16 only on
        # MXU operands; carry / elementwise / tanh stay f32 (v5e has no bf16
        # VPU/EUP).
        def step(i, hs):
            new = []
            for c in range(n_chains):
                r0 = pl.multiple_of(i * Bt + c * rpc, rpc)
                z = read_ref[pl.ds(r0, rpc), :] + jnp.dot(
                    hs[c].astype(mxu_dtype), whh_ref[...],
                    preferred_element_type=jnp.float32)
                new.append(jnp.tanh(z))
            return tuple(new)

        h0 = tuple(h_ref[c * rpc:(c + 1) * rpc, :] for c in range(n_chains))
        hs = lax.fori_loop(0, Tc, step, h0, unroll=True)
        for c in range(n_chains):
            h_ref[c * rpc:(c + 1) * rpc, :] = hs[c]

    # ---- Pipeline prologue: reset the carry, hoist chunk 0's projection. ----
    # Correctness depends on the time axis being the innermost, "arbitrary"
    # grid axis: h/pre scratch persist across its steps and are re-primed here
    # once per batch tile.  Do not reorder the grid axes.
    @pl.when(tc == 0)
    def _prologue():
        h_ref[...] = jnp.zeros_like(h_ref)
        x_proj(pre0_ref)

    # ---- Steady state: ping/pong on step parity.  On the final step the
    # x-proj redundantly recomputes the last chunk into the unused buffer (its
    # index map is clamped, so no extra DMA); that throwaway matmul is cheaper
    # than splitting the basic block with another pl.when.
    @pl.when(tc % 2 == 1)
    def _odd():
        recur(pre0_ref)
        x_proj(pre1_ref)

    @pl.when(jnp.logical_and(tc > 0, tc % 2 == 0))
    def _even():
        recur(pre1_ref)
        x_proj(pre0_ref)

    # ---- Final fc after the last chunk; O padded to 128 -> lane-dense store.
    # out_ref is a revisited output block along the time axis and is written
    # only here, so the value stored on the last step is what lands in HBM.
    @pl.when(tc == n_steps - 1)
    def _finalize():
        out_ref[...] = (
            jnp.dot(h_ref[...].astype(mxu_dtype), wfc_ref[...],
                    preferred_element_type=jnp.float32)
            + bfc_ref[...]
        )


def rnn_forward(tokens, params, *, time_chunk=None, batch_tile=None,
                mxu_dtype=jnp.bfloat16, vmem_budget_bytes=48 * 2**20):
    """Equivalent of RNN.forward(x): emb -> tanh RNN -> fc(out[:, -1, :])."""
    B, T = tokens.shape
    E = params["emb"].shape[1]
    H = params["w_hh"].shape[0]
    O = params["w_fc"].shape[0]

    E_pad = _round_up(E, 128)
    H_pad = _round_up(H, 128)
    O_pad = _round_up(O, 128)   # lane-dense output slab; real O sliced out below
    B_pad = _round_up(B, 8)     # sublane alignment

    Bt = _pick_batch_tile(B_pad, H_pad, batch_tile)
    assert B_pad % Bt == 0
    n_bt = B_pad // Bt

    # Resident weight/bias bytes (constant index maps are still double-buffered
    # by default).
    # TODO(synk): single-buffer the constant-index weight specs via
    # pipeline_mode=pl.Buffered(1) once that pallas_call path is verified on
    # this JAX version; it halves resident weight VMEM for large H (v7x 64 MiB).
    weight_bytes = 2 * (2 * (E_pad * H_pad + H_pad * H_pad + H_pad * O_pad)
                        + 4 * (H_pad + O_pad))

    if time_chunk is None:
        Tc = _pick_time_chunk(T, Bt, E_pad, H_pad, O_pad, weight_bytes,
                              vmem_budget_bytes)
    else:
        Tc = time_chunk
    assert T % Tc == 0
    n_chunks = T // Tc

    # ---- glue in plain JAX: embedding gather + layout prep ----
    # Gather in bf16 and directly time-major (tokens.T): half the HBM bytes and
    # no separate (B,T,E)->(T,B,E) transpose pass for this memory-bound glue.
    emb_tbl = params["emb"].astype(mxu_dtype)
    emb = jnp.take(emb_tbl, tokens.T, axis=0)                       # (T, B, E)
    emb = jnp.pad(emb, ((0, 0), (0, B_pad - B), (0, E_pad - E)))    # (T, B_pad, E_pad)
    # Batch-tile major, (time, within-tile-row) flattened so each grid step sees
    # one lane/sublane-aligned 2-D slab -> a single (Tc*Bt, E_pad) matmul/chunk.
    emb = jnp.transpose(emb.reshape(T, n_bt, Bt, E_pad), (1, 0, 2, 3))
    emb = emb.reshape(n_bt, T * Bt, E_pad)

    wih = jnp.pad(params["w_ih"].T, ((0, E_pad - E), (0, H_pad - H))).astype(mxu_dtype)
    whh = jnp.pad(params["w_hh"].T, ((0, H_pad - H), (0, H_pad - H))).astype(mxu_dtype)
    # Padded H lanes stay exactly 0 through the recurrence only because the
    # padded bias lanes are 0 and tanh(0) == 0; padded batch rows compute junk
    # but are sliced off below.  Keep those invariants if the nonlinearity or
    # padding scheme ever changes.
    b = jnp.pad(params["b_ih"] + params["b_hh"], (0, H_pad - H))
    b = b.astype(jnp.float32)[None, :]
    wfc = jnp.pad(params["w_fc"].T, ((0, H_pad - H), (0, O_pad - O))).astype(mxu_dtype)
    bfc = jnp.pad(params["b_fc"], (0, O_pad - O)).astype(jnp.float32)[None, :]

    # Grid: (parallel batch tiles, serial pipeline steps).  Time gets one extra
    # step because the x-projection runs one chunk ahead of the recurrence.
    # The time axis MUST stay innermost and "arbitrary" (scratch carry).
    grid = (n_bt, n_chunks + 1)

    vmem_need = (2 * Tc * Bt * E_pad * 2
                 + 2 * Tc * Bt * H_pad * 4
                 + Bt * H_pad * 4
                 + 2 * Bt * O_pad * 4
                 + weight_bytes)
    vmem_limit = int(min(56 * 2**20, max(32 * 2**20, int(vmem_need * 1.25))))

    cost = pl.CostEstimate(
        flops=2 * B_pad * T * (E_pad + H_pad) * H_pad + 2 * B_pad * H_pad * O_pad,
        transcendentals=B_pad * T * H_pad,
        bytes_accessed=(emb.size * 2
                        + (wih.size + whh.size + wfc.size) * 2
                        + (b.size + bfc.size) * 4
                        + B_pad * O_pad * 4),
    )

    out = pl.pallas_call(
        rnn_fc_kernel,
        out_shape=jax.ShapeDtypeStruct((B_pad, O_pad), jnp.float32),
        grid_spec=pltpu.PrefetchScalarGridSpec(
            num_scalar_prefetch=0,
            grid=grid,
            in_specs=[
                # emb: block tc is the chunk hoisted at grid step tc; clamped on
                # the extra final step (same block index -> no re-DMA).
                pl.BlockSpec((1, Tc * Bt, E_pad),
                             lambda bt, tc: (bt, jnp.minimum(tc, n_chunks - 1), 0)),
                # weights / biases: constant index maps -> stay resident in VMEM
                pl.BlockSpec((E_pad, H_pad), lambda bt, tc: (0, 0)),
                pl.BlockSpec((H_pad, H_pad), lambda bt, tc: (0, 0)),
                pl.BlockSpec((1, H_pad), lambda bt, tc: (0, 0)),
                pl.BlockSpec((H_pad, O_pad), lambda bt, tc: (0, 0)),
                pl.BlockSpec((1, O_pad), lambda bt, tc: (0, 0)),
            ],
            out_specs=pl.BlockSpec((Bt, O_pad), lambda bt, tc: (bt, 0)),
            scratch_shapes=[
                pltpu.VMEM((Bt, H_pad), jnp.float32),        # hidden-state carry
                pltpu.VMEM((Tc * Bt, H_pad), jnp.float32),   # x-proj ping
                pltpu.VMEM((Tc * Bt, H_pad), jnp.float32),   # x-proj pong
            ],
        ),
        compiler_params=pltpu.CompilerParams(
            dimension_semantics=("parallel", "arbitrary"),
            vmem_limit_bytes=vmem_limit,
        ),
        cost_estimate=cost,
    )(emb, wih, whh, b, wfc, bfc)

    return out[:B, :O]


def rnn_reference(tokens, params, mxu_dtype=jnp.float32):
    """Pure-JAX reference. mxu_dtype=bf16 mirrors the kernel's mixed precision;
    mxu_dtype=f32 is the exact PyTorch-module semantics."""
    emb = jnp.take(params["emb"], tokens, axis=0).astype(mxu_dtype)
    B, T, _ = emb.shape
    H = params["w_hh"].shape[0]
    wih = params["w_ih"].T.astype(mxu_dtype)
    whh = params["w_hh"].T.astype(mxu_dtype)
    wfc = params["w_fc"].T.astype(mxu_dtype)
    b = (params["b_ih"] + params["b_hh"]).astype(jnp.float32)
    h = jnp.zeros((B, H), jnp.float32)
    for t in range(T):
        pre = (jnp.dot(emb[:, t, :], wih, preferred_element_type=jnp.float32)
               + jnp.dot(h.astype(mxu_dtype), whh, preferred_element_type=jnp.float32)
               + b)
        h = jnp.tanh(pre)
    return (jnp.dot(h.astype(mxu_dtype), wfc, preferred_element_type=jnp.float32)
            + params["b_fc"])


def init_params(key, vocab_size, emb_size, hidden_size, output_size, padding_idx=0):
    ks = jax.random.split(key, 7)
    k_rnn = 1.0 / jnp.sqrt(hidden_size)
    k_fc = 1.0 / jnp.sqrt(hidden_size)

    emb = jax.random.normal(ks[0], (vocab_size, emb_size), jnp.float32)
    emb = emb.at[padding_idx].set(0.0)  # nn.Embedding padding_idx row is zero

    return {
        "emb": emb,
        "w_ih": jax.random.uniform(ks[1], (hidden_size, emb_size), jnp.float32, -k_rnn, k_rnn),
        "w_hh": jax.random.uniform(ks[2], (hidden_size, hidden_size), jnp.float32, -k_rnn, k_rnn),
        "b_ih": jax.random.uniform(ks[3], (hidden_size,), jnp.float32, -k_rnn, k_rnn),
        "b_hh": jax.random.uniform(ks[4], (hidden_size,), jnp.float32, -k_rnn, k_rnn),
        "w_fc": jax.random.uniform(ks[5], (output_size, hidden_size), jnp.float32, -k_fc, k_fc),
        "b_fc": jax.random.uniform(ks[6], (output_size,), jnp.float32, -k_fc, k_fc),
    }


if __name__ == "__main__":
    key = jax.random.PRNGKey(0)

    # ---- primary config: tokens (B, T) -> emb -> RNN hidden -> fc -> (B, 1) ----
    B, T = 2, 8
    vocab_size, emb_size, hidden_size, output_size = 20, 32, 32, 1
    k_tok, k_par, key = jax.random.split(key, 3)
    params = init_params(k_par, vocab_size, emb_size, hidden_size, output_size)
    tokens = jax.random.randint(k_tok, (B, T), 0, vocab_size, dtype=jnp.int32)

    # Small explicit time_chunk so the prologue / odd / even pipeline branches
    # all get exercised (n_chunks = 4 -> 5 pipeline steps).
    fwd = jax.jit(functools.partial(rnn_forward, time_chunk=2))
    out = jax.block_until_ready(fwd(tokens, params))
    assert out.shape == (B, output_size)

    # Tight check against a reference with the same mixed precision as the
    # kernel (bf16 MXU operands, f32 accumulation / elementwise).
    ref_mixed = rnn_reference(tokens, params, mxu_dtype=jnp.bfloat16)
    assert jnp.allclose(out, ref_mixed, atol=1e-3, rtol=1e-3), (out, ref_mixed)

    # Loose check against the exact f32 PyTorch semantics: the only deviation is
    # the bf16 weight/activation cast on the MXU path; the gap compounds over T
    # through the recurrence, hence the loose tolerance.
    ref_f32 = rnn_reference(tokens, params, mxu_dtype=jnp.float32)
    assert float(jnp.max(jnp.abs(out - ref_f32))) < 1e-1, (out, ref_f32)

    # Auto time-chunk / VMEM-budget path.
    out_auto = jax.block_until_ready(jax.jit(rnn_forward)(tokens, params))
    assert jnp.allclose(out_auto, ref_mixed, atol=1e-3, rtol=1e-3)

    # ---- secondary config: multiple batch tiles + 2-way interleaved sub-chains ----
    B2, T2 = 32, 6
    vocab2, emb2, hidden2, out_sz2 = 30, 48, 40, 3
    k_tok2, k_par2, key = jax.random.split(key, 3)
    params2 = init_params(k_par2, vocab2, emb2, hidden2, out_sz2)
    tokens2 = jax.random.randint(k_tok2, (B2, T2), 0, vocab2, dtype=jnp.int32)

    fwd2 = jax.jit(functools.partial(rnn_forward, time_chunk=3, batch_tile=16))
    out2 = jax.block_until_ready(fwd2(tokens2, params2))
    assert out2.shape == (B2, out_sz2)
    ref2 = rnn_reference(tokens2, params2, mxu_dtype=jnp.bfloat16)
    assert jnp.allclose(out2, ref2, atol=1e-3, rtol=1e-3), (out2, ref2)

    print("KERNEL_OK")
</pallas_src>

<mosaic_0001>
module attributes {stable_mosaic.version = 11 : i64} {
  func.func @rnn_fc_kernel(%arg0: i32, %arg1: i32, %arg2: memref<1x16x128xbf16, #tpu.memory_space<vmem>>, %arg3: memref<128x128xbf16, #tpu.memory_space<vmem>>, %arg4: memref<128x128xbf16, #tpu.memory_space<vmem>>, %arg5: memref<1x128xf32, #tpu.memory_space<vmem>>, %arg6: memref<128x128xbf16, #tpu.memory_space<vmem>>, %arg7: memref<1x128xf32, #tpu.memory_space<vmem>>, %arg8: memref<8x128xf32, #tpu.memory_space<vmem>>, %arg9: memref<8x128xf32, #tpu.memory_space<vmem>>, %arg10: memref<16x128xf32, #tpu.memory_space<vmem>>, %arg11: memref<16x128xf32, #tpu.memory_space<vmem>>) attributes {dimension_semantics = [#tpu.dimension_semantics<parallel>, #tpu.dimension_semantics<arbitrary>], iteration_bounds = array<i64: 1, 5>, scalar_prefetch = 0 : i64, scratch_operands = 3 : i64, tpu.core_type = #tpu.core_type<tc>, window_params = [{transform_indices = @transform_0, window_bounds = array<i64: 1, 16, 128>}, {pipeline_mode = #tpu.pipeline_mode<synchronous>, transform_indices = @transform_1, window_bounds = array<i64: 128, 128>}, {pipeline_mode = #tpu.pipeline_mode<synchronous>, transform_indices = @transform_2, window_bounds = array<i64: 128, 128>}, {pipeline_mode = #tpu.pipeline_mode<synchronous>, transform_indices = @transform_3, window_bounds = array<i64: 1, 128>}, {pipeline_mode = #tpu.pipeline_mode<synchronous>, transform_indices = @transform_4, window_bounds = array<i64: 128, 128>}, {pipeline_mode = #tpu.pipeline_mode<synchronous>, transform_indices = @transform_5, window_bounds = array<i64: 1, 128>}, {transform_indices = @transform_6, window_bounds = array<i64: 8, 128>}]} {
    %c0_i32 = arith.constant 0 : i32
    %0 = arith.cmpi eq, %arg1, %c0_i32 : i32
    %1 = arith.extui %0 : i1 to i32
    %c0_i32_0 = arith.constant 0 : i32
    %2 = arith.cmpi ne, %1, %c0_i32_0 : i32
    scf.if %2 {
      %cst = arith.constant 0.000000e+00 : f32
      %34 = vector.broadcast %cst : f32 to vector<8x128xf32>
      %c0 = arith.constant 0 : index
      %c0_17 = arith.constant 0 : index
      %35 = vector.load %arg9[%c0, %c0_17] : memref<8x128xf32, #tpu.memory_space<vmem>>, vector<8x128xf32>
      tpu.vector_store %arg9[%c0, %c0_17], %34 {strides = array<i32>} : memref<8x128xf32, #tpu.memory_space<vmem>>, vector<8x128xf32>,
      %c0_18 = arith.constant 0 : index
      %c0_19 = arith.constant 0 : index
      %c0_20 = arith.constant 0 : index
      %36 = vector.load %arg2[%c0_18, %c0_19, %c0_20] : memref<1x16x128xbf16, #tpu.memory_space<vmem>>, vector<1x16x128xbf16>
      %37 = vector.shape_cast %36 : vector<1x16x128xbf16> to vector<16x128xbf16>
      %c0_21 = arith.constant 0 : index
      %c0_22 = arith.constant 0 : index
      %38 = vector.load %arg3[%c0_21, %c0_22] : memref<128x128xbf16, #tpu.memory_space<vmem>>, vector<128x128xbf16>
      %cst_23 = arith.constant dense<0.000000e+00> : vector<16x128xf32>
      %39 = tpu.matmul %37, %38, %cst_23 {dimension_numbers = #tpu.dot_dimension_numbers<[1], [0], [0], [1], [0, 0, 1, 1], [], []>} : vector<16x128xbf16>, vector<128x128xbf16>, vector<16x128xf32> -> vector<16x128xf32>
      %c0_24 = arith.constant 0 : index
      %c0_25 = arith.constant 0 : index
      %40 = vector.load %arg5[%c0_24, %c0_25] : memref<1x128xf32, #tpu.memory_space<vmem>>, vector<1x128xf32>
      %41 = vector.broadcast %40 : vector<1x128xf32> to vector<16x128xf32>
      %42 = arith.addf %39, %41 : vector<16x128xf32>
      %c0_26 = arith.constant 0 : index
      %c0_27 = arith.constant 0 : index
      %43 = vector.load %arg10[%c0_26, %c0_27] : memref<16x128xf32, #tpu.memory_space<vmem>>, vector<16x128xf32>
      tpu.vector_store %arg10[%c0_26, %c0_27], %42 {strides = array<i32>} : memref<16x128xf32, #tpu.memory_space<vmem>>, vector<16x128xf32>,
    } else {
    }
    %c2_i32 = arith.constant 2 : i32
    %c0_i32_1 = arith.constant 0 : i32
    %3 = arith.cmpi eq, %c2_i32, %c0_i32_1 : i32
    %c1_i32 = arith.constant 1 : i32
    %4 = arith.select %3, %c1_i32, %c2_i32 : i32
    %5 = arith.remsi %arg1, %4 : i32
    %c0_i32_2 = arith.constant 0 : i32
    %6 = arith.cmpi ne, %5, %c0_i32_2 : i32
    %c0_i32_3 = arith.constant 0 : i32
    %7 = arith.cmpi slt, %5, %c0_i32_3 : i32
    %c0_i32_4 = arith.constant 0 : i32
    %8 = arith.cmpi slt, %4, %c0_i32_4 : i32
    %9 = arith.xori %7, %8 : i1
    %10 = arith.andi %9, %6 : i1
    %11 = arith.addi %5, %4 : i32
    %12 = arith.select %10, %11, %5 : i32
    %c1_i32_5 = arith.constant 1 : i32
    %13 = arith.cmpi eq, %12, %c1_i32_5 : i32
    %14 = arith.extui %13 : i1 to i32
    %c0_i32_6 = arith.constant 0 : i32
    %15 = arith.cmpi ne, %14, %c0_i32_6 : i32
    scf.if %15 {
      %c0 = arith.constant 0 : index
      %c0_17 = arith.constant 0 : index
      %34 = vector.load %arg9[%c0, %c0_17] : memref<8x128xf32, #tpu.memory_space<vmem>>, vector<8x128xf32>
      %c0_i32_18 = arith.constant 0 : i32
      %c8_i32 = arith.constant 8 : i32
      %35 = arith.muli %c0_i32_18, %c8_i32 : i32
      %c0_i32_19 = arith.constant 0 : i32
      %36 = arith.addi %35, %c0_i32_19 : i32
      %37 = tpu.assume_multiple %36, 8 : i32
      %38 = arith.index_cast %37 : i32 to index
      %c0_20 = arith.constant 0 : index
      %39 = vector.load %arg10[%38, %c0_20] : memref<16x128xf32, #tpu.memory_space<vmem>>, vector<8x128xf32>
      %40 = arith.truncf %34 : vector<8x128xf32> to vector<8x128xbf16>
      %c0_21 = arith.constant 0 : index
      %c0_22 = arith.constant 0 : index
      %41 = vector.load %arg4[%c0_21, %c0_22] : memref<128x128xbf16, #tpu.memory_space<vmem>>, vector<128x128xbf16>
      %cst = arith.constant dense<0.000000e+00> : vector<8x128xf32>
      %42 = tpu.matmul %40, %41, %cst {dimension_numbers = #tpu.dot_dimension_numbers<[1], [0], [0], [1], [0, 0, 1, 1], [], []>} : vector<8x128xbf16>, vector<128x128xbf16>, vector<8x128xf32> -> vector<8x128xf32>
      %43 = arith.addf %39, %42 : vector<8x128xf32>
      %44 = math.tanh %43 : vector<8x128xf32>
      %c1_i32_23 = arith.constant 1 : i32
      %c8_i32_24 = arith.constant 8 : i32
      %45 = arith.muli %c1_i32_23, %c8_i32_24 : i32
      %c0_i32_25 = arith.constant 0 : i32
      %46 = arith.addi %45, %c0_i32_25 : i32
      %47 = tpu.assume_multiple %46, 8 : i32
      %48 = arith.index_cast %47 : i32 to index
      %c0_26 = arith.constant 0 : index
      %49 = vector.load %arg10[%48, %c0_26] : memref<16x128xf32, #tpu.memory_space<vmem>>, vector<8x128xf32>
      %50 = arith.truncf %44 : vector<8x128xf32> to vector<8x128xbf16>
      %c0_27 = arith.constant 0 : index
      %c0_28 = arith.constant 0 : index
      %51 = vector.load %arg4[%c0_27, %c0_28] : memref<128x128xbf16, #tpu.memory_space<vmem>>, vector<128x128xbf16>
      %cst_29 = arith.constant dense<0.000000e+00> : vector<8x128xf32>
      %52 = tpu.matmul %50, %51, %cst_29 {dimension_numbers = #tpu.dot_dimension_numbers<[1], [0], [0], [1], [0, 0, 1, 1], [], []>} : vector<8x128xbf16>, vector<128x128xbf16>, vector<8x128xf32> -> vector<8x128xf32>
      %53 = arith.addf %49, %52 : vector<8x128xf32>
      %54 = math.tanh %53 : vector<8x128xf32>
      %c2_i32_30 = arith.constant 2 : i32
      %c0_31 = arith.constant 0 : index
      %c0_32 = arith.constant 0 : index
      %55 = vector.load %arg9[%c0_31, %c0_32] : memref<8x128xf32, #tpu.memory_space<vmem>>, vector<8x128xf32>
      tpu.vector_store %arg9[%c0_31, %c0_32], %54 {strides = array<i32>} : memref<8x128xf32, #tpu.memory_space<vmem>>, vector<8x128xf32>,
      %c0_33 = arith.constant 0 : index
      %c0_34 = arith.constant 0 : index
      %c0_35 = arith.constant 0 : index
      %56 = vector.load %arg2[%c0_33, %c0_34, %c0_35] : memref<1x16x128xbf16, #tpu.memory_space<vmem>>, vector<1x16x128xbf16>
      %57 = vector.shape_cast %56 : vector<1x16x128xbf16> to vector<16x128xbf16>
      %c0_36 = arith.constant 0 : index
      %c0_37 = arith.constant 0 : index
      %58 = vector.load %arg3[%c0_36, %c0_37] : memref<128x128xbf16, #tpu.memory_space<vmem>>, vector<128x128xbf16>
      %cst_38 = arith.constant dense<0.000000e+00> : vector<16x128xf32>
      %59 = tpu.matmul %57, %58, %cst_38 {dimension_numbers = #tpu.dot_dimension_numbers<[1], [0], [0], [1], [0, 0, 1, 1], [], []>} : vector<16x128xbf16>, vector<128x128xbf16>, vector<16x128xf32> -> vector<16x128xf32>
      %c0_39 = arith.constant 0 : index
      %c0_40 = arith.constant 0 : index
      %60 = vector.load %arg5[%c0_39, %c0_40] : memref<1x128xf32, #tpu.memory_space<vmem>>, vector<1x128xf32>
      %61 = vector.broadcast %60 : vector<1x128xf32> to vector<16x128xf32>
      %62 = arith.addf %59, %61 : vector<16x128xf32>
      %c0_41 = arith.constant 0 : index
      %c0_42 = arith.constant 0 : index
      %63 = vector.load %arg11[%c0_41, %c0_42] : memref<16x128xf32, #tpu.memory_space<vmem>>, vector<16x128xf32>
      tpu.vector_store %arg11[%c0_41, %c0_42], %62 {strides = array<i32>} : memref<16x128xf32, #tpu.memory_space<vmem>>, vector<16x128xf32>,
    } else {
    }
    %c0_i32_7 = arith.constant 0 : i32
    %16 = arith.cmpi sgt, %arg1, %c0_i32_7 : i32
    %c2_i32_8 = arith.constant 2 : i32
    %c0_i32_9 = arith.constant 0 : i32
    %17 = arith.cmpi eq, %c2_i32_8, %c0_i32_9 : i32
    %c1_i32_10 = arith.constant 1 : i32
    %18 = arith.select %17, %c1_i32_10, %c2_i32_8 : i32
    %19 = arith.remsi %arg1, %18 : i32
    %c0_i32_11 = arith.constant 0 : i32
    %20 = arith.cmpi ne, %19, %c0_i32_11 : i32
    %c0_i32_12 = arith.constant 0 : i32
    %21 = arith.cmpi slt, %19, %c0_i32_12 : i32
    %c0_i32_13 = arith.constant 0 : i32
    %22 = arith.cmpi slt, %18, %c0_i32_13 : i32
    %23 = arith.xori %21, %22 : i1
    %24 = arith.andi %23, %20 : i1
    %25 = arith.addi %19, %18 : i32
    %26 = arith.select %24, %25, %19 : i32
    %c0_i32_14 = arith.constant 0 : i32
    %27 = arith.cmpi eq, %26, %c0_i32_14 : i32
    %28 = arith.andi %16, %27 : i1
    %29 = arith.extui %28 : i1 to i32
    %c0_i32_15 = arith.constant 0 : i32
    %30 = arith.cmpi ne, %29, %c0_i32_15 : i32
    scf.if %30 {
      %c0 = arith.constant 0 : index
      %c0_17 = arith.constant 0 : index
      %34 = vector.load %arg9[%c0, %c0_17] : memref<8x128xf32, #tpu.memory_space<vmem>>, vector<8x128xf32>
      %c0_i32_18 = arith.constant 0 : i32
      %c8_i32 = arith.constant 8 : i32
      %35 = arith.muli %c0_i32_18, %c8_i32 : i32
      %c0_i32_19 = arith.constant 0 : i32
      %36 = arith.addi %35, %c0_i32_19 : i32
      %37 = tpu.assume_multiple %36, 8 : i32
      %38 = arith.index_cast %37 : i32 to index
      %c0_20 = arith.constant 0 : index
      %39 = vector.load %arg11[%38, %c0_20] : memref<16x128xf32, #tpu.memory_space<vmem>>, vector<8x128xf32>
      %40 = arith.truncf %34 : vector<8x128xf32> to vector<8x128xbf16>
      %c0_21 = arith.constant 0 : index
      %c0_22 = arith.constant 0 : index
      %41 = vector.load %arg4[%c0_21, %c0_22] : memref<128x128xbf16, #tpu.memory_space<vmem>>, vector<128x128xbf16>
      %cst = arith.constant dense<0.000000e+00> : vector<8x128xf32>
      %42 = tpu.matmul %40, %41, %cst {dimension_numbers = #tpu.dot_dimension_numbers<[1], [0], [0], [1], [0, 0, 1, 1], [], []>} : vector<8x128xbf16>, vector<128x128xbf16>, vector<8x128xf32> -> vector<8x128xf32>
      %43 = arith.addf %39, %42 : vector<8x128xf32>
      %44 = math.tanh %43 : vector<8x128xf32>
      %c1_i32_23 = arith.constant 1 : i32
      %c8_i32_24 = arith.constant 8 : i32
      %45 = arith.muli %c1_i32_23, %c8_i32_24 : i32
      %c0_i32_25 = arith.constant 0 : i32
      %46 = arith.addi %45, %c0_i32_25 : i32
      %47 = tpu.assume_multiple %46, 8 : i32
      %48 = arith.index_cast %47 : i32 to index
      %c0_26 = arith.constant 0 : index
      %49 = vector.load %arg11[%48, %c0_26] : memref<16x128xf32, #tpu.memory_space<vmem>>, vector<8x128xf32>
      %50 = arith.truncf %44 : vector<8x128xf32> to vector<8x128xbf16>
      %c0_27 = arith.constant 0 : index
      %c0_28 = arith.constant 0 : index
      %51 = vector.load %arg4[%c0_27, %c0_28] : memref<128x128xbf16, #tpu.memory_space<vmem>>, vector<128x128xbf16>
      %cst_29 = arith.constant dense<0.000000e+00> : vector<8x128xf32>
      %52 = tpu.matmul %50, %51, %cst_29 {dimension_numbers = #tpu.dot_dimension_numbers<[1], [0], [0], [1], [0, 0, 1, 1], [], []>} : vector<8x128xbf16>, vector<128x128xbf16>, vector<8x128xf32> -> vector<8x128xf32>
      %53 = arith.addf %49, %52 : vector<8x128xf32>
      %54 = math.tanh %53 : vector<8x128xf32>
      %c2_i32_30 = arith.constant 2 : i32
      %c0_31 = arith.constant 0 : index
      %c0_32 = arith.constant 0 : index
      %55 = vector.load %arg9[%c0_31, %c0_32] : memref<8x128xf32, #tpu.memory_space<vmem>>, vector<8x128xf32>
      tpu.vector_store %arg9[%c0_31, %c0_32], %54 {strides = array<i32>} : memref<8x128xf32, #tpu.memory_space<vmem>>, vector<8x128xf32>,
      %c0_33 = arith.constant 0 : index
      %c0_34 = arith.constant 0 : index
      %c0_35 = arith.constant 0 : index
      %56 = vector.load %arg2[%c0_33, %c0_34, %c0_35] : memref<1x16x128xbf16, #tpu.memory_space<vmem>>, vector<1x16x128xbf16>
      %57 = vector.shape_cast %56 : vector<1x16x128xbf16> to vector<16x128xbf16>
      %c0_36 = arith.constant 0 : index
      %c0_37 = arith.constant 0 : index
      %58 = vector.load %arg3[%c0_36, %c0_37] : memref<128x128xbf16, #tpu.memory_space<vmem>>, vector<128x128xbf16>
      %cst_38 = arith.constant dense<0.000000e+00> : vector<16x128xf32>
      %59 = tpu.matmul %57, %58, %cst_38 {dimension_numbers = #tpu.dot_dimension_numbers<[1], [0], [0], [1], [0, 0, 1, 1], [], []>} : vector<16x128xbf16>, vector<128x128xbf16>, vector<16x128xf32> -> vector<16x128xf32>
      %c0_39 = arith.constant 0 : index
      %c0_40 = arith.constant 0 : index
      %60 = vector.load %arg5[%c0_39, %c0_40] : memref<1x128xf32, #tpu.memory_space<vmem>>, vector<1x128xf32>
      %61 = vector.broadcast %60 : vector<1x128xf32> to vector<16x128xf32>
      %62 = arith.addf %59, %61 : vector<16x128xf32>
      %c0_41 = arith.constant 0 : index
      %c0_42 = arith.constant 0 : index
      %63 = vector.load %arg10[%c0_41, %c0_42] : memref<16x128xf32, #tpu.memory_space<vmem>>, vector<16x128xf32>
      tpu.vector_store %arg10[%c0_41, %c0_42], %62 {strides = array<i32>} : memref<16x128xf32, #tpu.memory_space<vmem>>, vector<16x128xf32>,
    } else {
    }
    %c4_i32 = arith.constant 4 : i32
    %31 = arith.cmpi eq, %arg1, %c4_i32 : i32
    %32 = arith.extui %31 : i1 to i32
    %c0_i32_16 = arith.constant 0 : i32
    %33 = arith.cmpi ne, %32, %c0_i32_16 : i32
    scf.if %33 {
      %c0 = arith.constant 0 : index
      %c0_17 = arith.constant 0 : index
      %34 = vector.load %arg9[%c0, %c0_17] : memref<8x128xf32, #tpu.memory_space<vmem>>, vector<8x128xf32>
      %35 = arith.truncf %34 : vector<8x128xf32> to vector<8x128xbf16>
      %c0_18 = arith.constant 0 : index
      %c0_19 = arith.constant 0 : index
      %36 = vector.load %arg6[%c0_18, %c0_19] : memref<128x128xbf16, #tpu.memory_space<vmem>>, vector<128x128xbf16>
      %cst = arith.constant dense<0.000000e+00> : vector<8x128xf32>
      %37 = tpu.matmul %35, %36, %cst {dimension_numbers = #tpu.dot_dimension_numbers<[1], [0], [0], [1], [0, 0, 1, 1], [], []>} : vector<8x128xbf16>, vector<128x128xbf16>, vector<8x128xf32> -> vector<8x128xf32>
      %c0_20 = arith.constant 0 : index
      %c0_21 = arith.constant 0 : index
      %38 = vector.load %arg7[%c0_20, %c0_21] : memref<1x128xf32, #tpu.memory_space<vmem>>, vector<1x128xf32>
      %39 = vector.broadcast %38 : vector<1x128xf32> to vector<8x128xf32>
      %40 = arith.addf %37, %39 : vector<8x128xf32>
      %c0_22 = arith.constant 0 : index
      %c0_23 = arith.constant 0 : index
      %41 = vector.load %arg8[%c0_22, %c0_23] : memref<8x128xf32, #tpu.memory_space<vmem>>, vector<8x128xf32>
      tpu.vector_store %arg8[%c0_22, %c0_23], %40 {strides = array<i32>} : memref<8x128xf32, #tpu.memory_space<vmem>>, vector<8x128xf32>,
    } else {
    }
    return
  }
  func.func @transform_0(%arg0: i32, %arg1: i32) -> (i32, i32, i32) {
    %c3_i32 = arith.constant 3 : i32
    %0 = arith.minsi %arg1, %c3_i32 : i32
    %c0_i32 = arith.constant 0 : i32
    %c0_i32_0 = arith.constant 0 : i32
    return %arg0, %0, %c0_i32 : i32, i32, i32
  }
  func.func @transform_1(%arg0: i32, %arg1: i32) -> (i32, i32) {
    %c0_i32 = arith.constant 0 : i32
    %c0_i32_0 = arith.constant 0 : i32
    %c0_i32_1 = arith.constant 0 : i32
    return %c0_i32, %c0_i32_0 : i32, i32
  }
  func.func @transform_2(%arg0: i32, %arg1: i32) -> (i32, i32) {
    %c0_i32 = arith.constant 0 : i32
    %c0_i32_0 = arith.constant 0 : i32
    %c0_i32_1 = arith.constant 0 : i32
    return %c0_i32, %c0_i32_0 : i32, i32
  }
  func.func @transform_3(%arg0: i32, %arg1: i32) -> (i32, i32) {
    %c0_i32 = arith.constant 0 : i32
    %c0_i32_0 = arith.constant 0 : i32
    %c0_i32_1 = arith.constant 0 : i32
    return %c0_i32, %c0_i32_0 : i32, i32
  }
  func.func @transform_4(%arg0: i32, %arg1: i32) -> (i32, i32) {
    %c0_i32 = arith.constant 0 : i32
    %c0_i32_0 = arith.constant 0 : i32
    %c0_i32_1 = arith.constant 0 : i32
    return %c0_i32, %c0_i32_0 : i32, i32
  }
  func.func @transform_5(%arg0: i32, %arg1: i32) -> (i32, i32) {
    %c0_i32 = arith.constant 0 : i32
    %c0_i32_0 = arith.constant 0 : i32
    %c0_i32_1 = arith.constant 0 : i32
    return %c0_i32, %c0_i32_0 : i32, i32
  }
  func.func @transform_6(%arg0: i32, %arg1: i32) -> (i32, i32) {
    %c0_i32 = arith.constant 0 : i32
    %c0_i32_0 = arith.constant 0 : i32
    return %arg0, %c0_i32 : i32, i32
  }
}

</mosaic_0001>

<llo_original>
// kernel: rnn_forward.1
$region0: #{rnn_forward.1}
  #allocation0 [shape = 'u32[]', space=smem, size = 0x4, offset = 0x4, fixed_abs, tag = 'smem constant byte address 0x4 - core index']
  #allocation1 [shape = 'u32[72,128]{1,0:T(1,128)}', space=vmem, size = 0x9000, scoped, tag = 'internal scratch']
  #allocation2 [shape = 'f32[8,128]{1,0:T(8,128)}', space=vmem, size = 0x1000, scoped, tag = 'scratch operand']
  #allocation3 [shape = 'f32[16,128]{1,0:T(8,128)}', space=vmem, size = 0x2000, scoped, tag = 'scratch operand']
  #allocation4 [shape = 'f32[16,128]{1,0:T(8,128)}', space=vmem, size = 0x2000, scoped, tag = 'scratch operand']
  %s0 = inlined_call_operand.vmem [shape: bf16[1,64,128], index: 0, kind: input, shape index: {}]
  %s1 = inlined_call_operand.vmem [shape: bf16[128,128], index: 1, kind: input, shape index: {}]
  %s2 = inlined_call_operand.vmem [shape: bf16[128,128], index: 2, kind: input, shape index: {}]
  %s3 = inlined_call_operand.vmem [shape: f32[1,128], index: 3, kind: input, shape index: {}]
  %s4 = inlined_call_operand.vmem [shape: bf16[128,128], index: 4, kind: input, shape index: {}]
  %s5 = inlined_call_operand.vmem [shape: f32[1,128], index: 5, kind: input, shape index: {}]
  %s6 = inlined_call_operand.vmem [shape: f32[8,128], index: 6, kind: output, shape index: {}]
  %s7 = sld [smem:[#allocation0]]
  $region73: #{rnn_forward.1} parent=0
    _
  %s9 = ssub.s32 1, %s7
  %s10 = scalar_select 0, %s9, %s7
  loop: start=0, step=1, limit=7
  $region2: #{rnn_forward.1} parent=0 // loop_pre_header
    _
  $region3: #{rnn_forward.1} parent=0 // loop_header
    %s12 = sphi 0, %s16
    %p13 = scmp.ge.s32.totalorder %s12, 7
    %s19 = sphi 0, %s31
    %s20 = sphi 0, %s27
    %s21 = sphi 0, %s19
    %s22 = sphi 0, %s20
    %s23 = sphi 0, %s21
    %s24 = sphi 0, %s22
    %s40 = sphi 0, %s42
    %s43 = sphi 0, %s40
    %s44 = sphi 0, %s43
    %s60 = sphi 0, %s44
    %s64 = sphi 0, %s64
    %s66 = sphi 0, %s64
    %s67 = sphi 0, %s66
    %s81 = sphi 0, %s67
    %s85 = sphi 0, %s85
    %s87 = sphi 0, %s85
    %s88 = sphi 0, %s87
    %s102 = sphi 0, %s88
    %s106 = sphi 0, %s106
    %s108 = sphi 0, %s106
    %s109 = sphi 0, %s108
    %s123 = sphi 0, %s109
    %s127 = sphi 0, %s127
    %s129 = sphi 0, %s127
    %s130 = sphi 0, %s129
    %s144 = sphi 0, %s130
    %s148 = sphi 0, %s148
    %s150 = sphi 0, %s148
    %s151 = sphi 0, %s150
    %s165 = sphi 0, %s151
    %s171 = sphi 0, %s173
    %s174 = sphi 0, %s171
    %s175 = sphi 0, %s174
    %s191 = sphi 0, %s175
  $region4: #{rnn_forward.1} parent=0 // loop_header_branch
    %15 = sbr.rel (%p13) target = $region8
  $region5: #{rnn_forward.1} parent=0 // loop_body
    %s17 = ssub.s32 %s12, 1
    %s18 = ssub.s32 %s12, 2
    %s25 = sadd.s32 1, %s20
    %p26 = scmp.ge.s32.totalorder %s25, 5
    %s27 = scalar_select %p26, 0, %s25
    %s28 = sadd.s32 1, %s19
    %s29 = scalar_select %p26, %s28, %s19
    %p30 = scmp.ge.s32.totalorder %s29, 1
    %s31 = scalar_select %p30, 0, %s29
    %p32 = scmp.lt.s32.totalorder %s20, 3
    %s33 = scalar_select %p32, %s20, 3
    %p34 = scmp.lt.s32.totalorder %s27, 3
    %s35 = scalar_select %p34, %s27, 3
    %s36 = ssub.s32 %s19, %s31
    %s37 = ssub.s32 %s33, %s35
    %s38 = sor.u32 %s36, %s37
    %p39 = scmp.eq.s32.totalorder %s38, 0
    %s41 = sadd.s32 %s40, 1
    %s42 = scalar_select %p39, %s40, %s41
    %p45 = pneg %p39
    %p46 = scmp.eq.s32.totalorder %s12, 4
    %p47 = por %p45, %p46
    %p48 = scmp.ne.s32.totalorder %s40, %s43
    %p49 = scmp.eq.s32.totalorder %s12, 0
    %p50 = por %p48, %p49
    %p51 = scmp.ne.s32.totalorder %s40, %s43
    %p52 = scmp.eq.s32.totalorder %s17, 4
    %p53 = por %p51, %p52
    %p54 = scmp.ne.s32.totalorder %s43, %s44
    %p55 = scmp.eq.s32.totalorder %s17, 0
    %p56 = por %p54, %p55
    %p57 = scmp.ne.s32.totalorder %s43, %s44
    %p58 = scmp.eq.s32.totalorder %s18, 4
    %p59 = por %p57, %p58
    %p61 = scmp.ne.s32.totalorder %s44, %s60
    %p62 = scmp.eq.s32.totalorder %s18, 0
    %p63 = por %p61, %p62
    %s65 = sadd.s32 %s64, 1
    %p68 = scmp.eq.s32.totalorder %s12, 4
    %p69 = scmp.ne.s32.totalorder %s64, %s66
    %p70 = scmp.eq.s32.totalorder %s12, 0
    %p71 = por %p69, %p70
    %p72 = scmp.ne.s32.totalorder %s64, %s66
    %p73 = scmp.eq.s32.totalorder %s17, 4
    %p74 = por %p72, %p73
    %p75 = scmp.ne.s32.totalorder %s66, %s67
    %p76 = scmp.eq.s32.totalorder %s17, 0
    %p77 = por %p75, %p76
    %p78 = scmp.ne.s32.totalorder %s66, %s67
    %p79 = scmp.eq.s32.totalorder %s18, 4
    %p80 = por %p78, %p79
    %p82 = scmp.ne.s32.totalorder %s67, %s81
    %p83 = scmp.eq.s32.totalorder %s18, 0
    %p84 = por %p82, %p83
    %s86 = sadd.s32 %s85, 1
    %p89 = scmp.eq.s32.totalorder %s12, 4
    %p90 = scmp.ne.s32.totalorder %s85, %s87
    %p91 = scmp.eq.s32.totalorder %s12, 0
    %p92 = por %p90, %p91
    %p93 = scmp.ne.s32.totalorder %s85, %s87
    %p94 = scmp.eq.s32.totalorder %s17, 4
    %p95 = por %p93, %p94
    %p96 = scmp.ne.s32.totalorder %s87, %s88
    %p97 = scmp.eq.s32.totalorder %s17, 0
    %p98 = por %p96, %p97
    %p99 = scmp.ne.s32.totalorder %s87, %s88
    %p100 = scmp.eq.s32.totalorder %s18, 4
    %p101 = por %p99, %p100
    %p103 = scmp.ne.s32.totalorder %s88, %s102
    %p104 = scmp.eq.s32.totalorder %s18, 0
    %p105 = por %p103, %p104
    %s107 = sadd.s32 %s106, 1
    %p110 = scmp.eq.s32.totalorder %s12, 4
    %p111 = scmp.ne.s32.totalorder %s106, %s108
    %p112 = scmp.eq.s32.totalorder %s12, 0
    %p113 = por %p111, %p112
    %p114 = scmp.ne.s32.totalorder %s106, %s108
    %p115 = scmp.eq.s32.totalorder %s17, 4
    %p116 = por %p114, %p115
    %p117 = scmp.ne.s32.totalorder %s108, %s109
    %p118 = scmp.eq.s32.totalorder %s17, 0
    %p119 = por %p117, %p118
    %p120 = scmp.ne.s32.totalorder %s108, %s109
    %p121 = scmp.eq.s32.totalorder %s18, 4
    %p122 = por %p120, %p121
    %p124 = scmp.ne.s32.totalorder %s109, %s123
    %p125 = scmp.eq.s32.totalorder %s18, 0
    %p126 = por %p124, %p125
    %s128 = sadd.s32 %s127, 1
    %p131 = scmp.eq.s32.totalorder %s12, 4
    %p132 = scmp.ne.s32.totalorder %s127, %s129
    %p133 = scmp.eq.s32.totalorder %s12, 0
    %p134 = por %p132, %p133
    %p135 = scmp.ne.s32.totalorder %s127, %s129
    %p136 = scmp.eq.s32.totalorder %s17, 4
    %p137 = por %p135, %p136
    %p138 = scmp.ne.s32.totalorder %s129, %s130
    %p139 = scmp.eq.s32.totalorder %s17, 0
    %p140 = por %p138, %p139
    %p141 = scmp.ne.s32.totalorder %s129, %s130
    %p142 = scmp.eq.s32.totalorder %s18, 4
    %p143 = por %p141, %p142
    %p145 = scmp.ne.s32.totalorder %s130, %s144
    %p146 = scmp.eq.s32.totalorder %s18, 0
    %p147 = por %p145, %p146
    %s149 = sadd.s32 %s148, 1
    %p152 = scmp.eq.s32.totalorder %s12, 4
    %p153 = scmp.ne.s32.totalorder %s148, %s150
    %p154 = scmp.eq.s32.totalorder %s12, 0
    %p155 = por %p153, %p154
    %p156 = scmp.ne.s32.totalorder %s148, %s150
    %p157 = scmp.eq.s32.totalorder %s17, 4
    %p158 = por %p156, %p157
    %p159 = scmp.ne.s32.totalorder %s150, %s151
    %p160 = scmp.eq.s32.totalorder %s17, 0
    %p161 = por %p159, %p160
    %p162 = scmp.ne.s32.totalorder %s150, %s151
    %p163 = scmp.eq.s32.totalorder %s18, 4
    %p164 = por %p162, %p163
    %p166 = scmp.ne.s32.totalorder %s151, %s165
    %p167 = scmp.eq.s32.totalorder %s18, 0
    %p168 = por %p166, %p167
    %s169 = ssub.s32 %s19, %s31
    %p170 = scmp.eq.s32.totalorder %s169, 0
    %s172 = sadd.s32 %s171, 1
    %s173 = scalar_select %p170, %s171, %s172
    %p176 = pneg %p170
    %p177 = scmp.eq.s32.totalorder %s12, 4
    %p178 = por %p176, %p177
    %p179 = scmp.ne.s32.totalorder %s171, %s174
    %p180 = scmp.eq.s32.totalorder %s12, 0
    %p181 = por %p179, %p180
    %p182 = scmp.ne.s32.totalorder %s171, %s174
    %p183 = scmp.eq.s32.totalorder %s17, 4
    %p184 = por %p182, %p183
    %p185 = scmp.ne.s32.totalorder %s174, %s175
    %p186 = scmp.eq.s32.totalorder %s17, 0
    %p187 = por %p185, %p186
    %p188 = scmp.ne.s32.totalorder %s174, %s175
    %p189 = scmp.eq.s32.totalorder %s18, 4
    %p190 = por %p188, %p189
    %p192 = scmp.ne.s32.totalorder %s175, %s191
    %p193 = scmp.eq.s32.totalorder %s18, 0
    %p194 = por %p192, %p193
    %p195 = scmp.le.s32.totalorder 1, %s12
    %p196 = scmp.lt.s32.totalorder %s12, 6
    %p197 = pnand %p195, %p196
    %p198 = pneg %p197
    // Predicated region
    $region9: #{rnn_forward.1} parent=5 // pred_check
      _
    $region10: #{rnn_forward.1} parent=5 // pred_check_branch
      %200 = sbr.rel (%p197) target = $region12
    $region11: #{rnn_forward.1} parent=5 // pred_region
      %s201 = ssub.s32 %s12, 1
      // Predicated region
      $region13: #{rnn_forward.1} parent=11 // pred_check
        %p202 = pneg %p77
      $region14: #{rnn_forward.1} parent=11 // pred_check_branch
        %204 = sbr.rel (%p202) target = $region16
      $region15: #{rnn_forward.1} parent=11 // pred_region
        _
      $region16: #{rnn_forward.1} parent=11 // pred_fallthru
        _
      // Predicated region
      $region17: #{rnn_forward.1} parent=11 // pred_check
        %p205 = pneg %p98
      $region18: #{rnn_forward.1} parent=11 // pred_check_branch
        %207 = sbr.rel (%p205) target = $region20
      $region19: #{rnn_forward.1} parent=11 // pred_region
        _
      $region20: #{rnn_forward.1} parent=11 // pred_fallthru
        _
      // Predicated region
      $region21: #{rnn_forward.1} parent=11 // pred_check
        %p208 = pneg %p119
      $region22: #{rnn_forward.1} parent=11 // pred_check_branch
        %210 = sbr.rel (%p208) target = $region24
      $region23: #{rnn_forward.1} parent=11 // pred_region
        _
      $region24: #{rnn_forward.1} parent=11 // pred_fallthru
        _
      // Predicated region
      $region25: #{rnn_forward.1} parent=11 // pred_check
        %p211 = pneg %p140
      $region26: #{rnn_forward.1} parent=11 // pred_check_branch
        %213 = sbr.rel (%p211) target = $region28
      $region27: #{rnn_forward.1} parent=11 // pred_region
        _
      $region28: #{rnn_forward.1} parent=11 // pred_fallthru
        _
      // Predicated region
      $region29: #{rnn_forward.1} parent=11 // pred_check
        %p214 = pneg %p161
      $region30: #{rnn_forward.1} parent=11 // pred_check_branch
        %216 = sbr.rel (%p214) target = $region32
      $region31: #{rnn_forward.1} parent=11 // pred_region
        _
      $region32: #{rnn_forward.1} parent=11 // pred_fallthru
        _
    $region12: #{rnn_forward.1} parent=5 // pred_fallthru
      _
    %p217 = scmp.lt.s32.totalorder %s12, 5
    // Predicated region
    $region33: #{rnn_forward.1} parent=5 // pred_check
      %p218 = pneg %p217
    $region34: #{rnn_forward.1} parent=5 // pred_check_branch
      %220 = sbr.rel (%p218) target = $region36
    $region35: #{rnn_forward.1} parent=5 // pred_region
      // Predicated region
      $region37: #{rnn_forward.1} parent=35 // pred_check
        %p221 = pneg %p50
      $region38: #{rnn_forward.1} parent=35 // pred_check_branch
        %223 = sbr.rel (%p221) target = $region40
      $region39: #{rnn_forward.1} parent=35 // pred_region
        %p224 = scmp.lt.s32.totalorder %s20, 3
        %s225 = scalar_select %p224, %s20, 3
        %s226 = smul.u32 2, %s225
        %p227 = scmp.lt.s32.totalorder %s19, 0
        %s228 = scalar_select %p227, %s19, 0
        %p229 = scmp.lt.s32.totalorder %s226, 7
        %s230 = scalar_select %p229, %s226, 7
        %s231 = smul.addr %s228, 8
        %s232 = sadd.s32 %s230, %s231
        %s233 = smul.addr %s232, 4
        %s234 = scalar_lea.vmem %s0, %s233
        %p235 = scmp.lt.s32.totalorder %s20, 3
        %s236 = scalar_select %p235, %s20, 3
        %s237 = smul.u32 2, %s236
      $region40: #{rnn_forward.1} parent=35 // pred_fallthru
        _
    $region36: #{rnn_forward.1} parent=5 // pred_fallthru
      _
    %p238 = scmp.le.s32.totalorder 1, %s12
    %p239 = scmp.lt.s32.totalorder %s12, 6
    %p240 = pnand %p238, %p239
    %p241 = pneg %p240
    // Predicated region
    $region41: #{rnn_forward.1} parent=5 // pred_check
      _
    $region42: #{rnn_forward.1} parent=5 // pred_check_branch
      %243 = sbr.rel (%p240) target = $region44
    $region43: #{rnn_forward.1} parent=5 // pred_region
      %s244 = ssub.s32 %s12, 1
      %p245 = scmp.lt.s32.totalorder %s22, 3
      %s246 = scalar_select %p245, %s22, 3
      %s247 = smul.u32 2, %s246
      %p248 = scmp.lt.s32.totalorder %s21, 0
      %s249 = scalar_select %p248, %s21, 0
      %p250 = scmp.lt.s32.totalorder %s247, 7
      %s251 = scalar_select %p250, %s247, 7
      %s252 = smul.addr %s249, 8
      %s253 = sadd.s32 %s251, %s252
      %s254 = smul.addr %s253, 4
      %s255 = scalar_lea.vmem %s0, %s254
      %p256 = pneg %p56
      %p257 = pneg %p53
      %p258 = pneg %p77
      %p259 = pneg %p74
      %p260 = pneg %p98
      %p261 = pneg %p95
      %p262 = pneg %p119
      %p263 = pneg %p116
      %p264 = pneg %p140
      %p265 = pneg %p137
      %p266 = pneg %p161
      %p267 = pneg %p158
      %p268 = pneg %p187
      %p269 = pneg %p184
      %p270 = scmp.lt.s32.totalorder %s21, 0
      %s271 = scalar_select %p270, %s21, 0
      %s272 = smul.addr %s271, 8
      %s273 = scalar_lea.vmem %s6, %s272
      %p274 = scmp.lt.s32.totalorder %s22, 3
      %s275 = scalar_select %p274, %s22, 3
      %s276 = smul.u32 2, %s275
      %p277 = scmp.lt.s32.totalorder %s21, 0
      %s278 = scalar_select %p277, %s21, 0
      %p279 = scmp.lt.s32.totalorder %s276, 7
      %s280 = scalar_select %p279, %s276, 7
      %s281 = smul.addr %s278, 8
      %s282 = sadd.s32 %s280, %s281
      %s283 = smul.addr %s282, 4
      %s284 = scalar_lea.vmem %s0, %s283
      %p285 = scmp.lt.s32.totalorder %s22, 3
      %s286 = scalar_select %p285, %s22, 3
      %s287 = smul.u32 2, %s286
      %p288 = scmp.lt.s32.totalorder %s21, 0
      %s289 = scalar_select %p288, %s21, 0
      %s290 = smul.addr %s289, 8
      %s291 = scalar_lea.vmem %s6, %s290
      %p292 = scmp.eq.s32.totalorder %s22, 0
      // Predicated region
      $region45: #{rnn_forward.1} parent=43 // pred_check
        %p293 = pneg %p292
      $region46: #{rnn_forward.1} parent=43 // pred_check_branch
        %295 = sbr.rel (%p293) target = $region48
      $region47: #{rnn_forward.1} parent=43 // pred_region
        %296 = vst [vmem:[#allocation2] sm:$0xff] 0.0
        %v297 = vld [vmem:[%s284] sm:$0xf]
        %v298 = vld [vmem:[%s284 + $0x4] sm:$0xf]
        %v299 = vld [vmem:[%s1] sm:$0xf]
        %v300 = vld [vmem:[%s1 + $0x4] sm:$0xf]
        %v301 = vld [vmem:[%s1 + $0x8] sm:$0xf]
        %v302 = vld [vmem:[%s1 + $0xc] sm:$0xf]
        %v303 = vld [vmem:[%s1 + $0x10] sm:$0xf]
        %v304 = vld [vmem:[%s1 + $0x14] sm:$0xf]
        %v305 = vld [vmem:[%s1 + $0x18] sm:$0xf]
        %v306 = vld [vmem:[%s1 + $0x1c] sm:$0xf]
        %v307 = vld [vmem:[%s1 + $0x20] sm:$0xf]
        %v308 = vld [vmem:[%s1 + $0x24] sm:$0xf]
        %v309 = vld [vmem:[%s1 + $0x28] sm:$0xf]
        %v310 = vld [vmem:[%s1 + $0x2c] sm:$0xf]
        %v311 = vld [vmem:[%s1 + $0x30] sm:$0xf]
        %v312 = vld [vmem:[%s1 + $0x34] sm:$0xf]
        %v313 = vld [vmem:[%s1 + $0x38] sm:$0xf]
        %v314 = vld [vmem:[%s1 + $0x3c] sm:$0xf]
        %v315 = vld [vmem:[%s3] sm:$0x1]
        %v317 = vperm.slane %v315, 0
        %v321 = vunpack.c.l.b16 %v297
        %v322 = vunpack.c.l.b16 %v298
        %v323 = vpack.c.b16 %v322, %v321
        %v341 = vunpack.c.l.b16 %v299
        %v342 = vunpack.c.l.b16 %v300
        %v343 = vunpack.c.l.b16 %v301
        %v344 = vunpack.c.l.b16 %v302
        %v345 = vunpack.c.l.b16 %v303
        %v346 = vunpack.c.l.b16 %v304
        %v347 = vunpack.c.l.b16 %v305
        %v348 = vunpack.c.l.b16 %v306
        %v349 = vunpack.c.l.b16 %v307
        %v350 = vunpack.c.l.b16 %v308
        %v351 = vunpack.c.l.b16 %v309
        %v352 = vunpack.c.l.b16 %v310
        %v353 = vunpack.c.l.b16 %v311
        %v354 = vunpack.c.l.b16 %v312
        %v355 = vunpack.c.l.b16 %v313
        %v356 = vunpack.c.l.b16 %v314
        %v357 = vpack.c.b16 %v342, %v341
        %v358 = vpack.c.b16 %v344, %v343
        %v359 = vpack.c.b16 %v346, %v345
        %v360 = vpack.c.b16 %v348, %v347
        %v361 = vpack.c.b16 %v350, %v349
        %v362 = vpack.c.b16 %v352, %v351
        %v363 = vpack.c.b16 %v354, %v353
        %v364 = vpack.c.b16 %v356, %v355
        %373 = vmatpush.bf16.msra.mxu0 %v364
        %374 = vmatpush.bf16.msra.mxu0 %v363
        %375 = vmatpush.bf16.msra.mxu0 %v362
        %376 = vmatpush.bf16.msra.mxu0 %v361
        %377 = vmatpush.bf16.msra.mxu0 %v360
        %378 = vmatpush.bf16.msra.mxu0 %v359
        %379 = vmatpush.bf16.msra.mxu0 %v358
        %380 = vmatpush.bf16.msra.mxu0 %v357
        %381 = vmatmul.bf16.gmra.mxu0 %v323
        %v382 = vpop.f32.mrf.mxu0
        %v383 = vadd.f32 %v317, %v382
        %v384 = vpop.f32.mrf.mxu0
        %v385 = vadd.f32 %v317, %v384
        %386 = vdwg.mxu0
        %387 = vst [vmem:[#allocation3] sm:$0xff] %v383
        %388 = vst [vmem:[#allocation3 + $0x8] sm:$0xff] %v385
      $region48: #{rnn_forward.1} parent=43 // pred_fallthru
        _
      %p389 = scmp.lt.s32.totalorder %s22, 0
      %s390 = ssub.s32 0, %s22
      %s391 = scalar_select %p389, %s390, %s22
      %s392 = sand.u32 %s391, 1
      %s393 = ssub.s32 0, %s392
      %s394 = scalar_select %p389, %s393, %s392
      %p395 = scmp.ne.s32.totalorder %s394, 0
      %p396 = scmp.lt.s32.totalorder %s394, 0
      %p397 = pnand %p396, %p395
      %p398 = pneg %p397
      %s399 = sadd.s32 %s394, 2
      %s400 = scalar_select %p398, %s399, %s394
      %p401 = scmp.eq.s32.totalorder %s400, 1
      // Predicated region
      $region49: #{rnn_forward.1} parent=43 // pred_check
        %p402 = pneg %p401
      $region50: #{rnn_forward.1} parent=43 // pred_check_branch
        %404 = sbr.rel (%p402) target = $region52
      $region51: #{rnn_forward.1} parent=43 // pred_region
        %v405 = vld [vmem:[#allocation2] sm:$0xff]
        %v406 = vld [vmem:[#allocation3] sm:$0xff]
        %v407 = vpack.c.bf16 %v405, %v405
        %v408 = vld [vmem:[%s2] sm:$0xf]
        %v409 = vld [vmem:[%s2 + $0x4] sm:$0xf]
        %v410 = vld [vmem:[%s2 + $0x8] sm:$0xf]
        %v411 = vld [vmem:[%s2 + $0xc] sm:$0xf]
        %v412 = vld [vmem:[%s2 + $0x10] sm:$0xf]
        %v413 = vld [vmem:[%s2 + $0x14] sm:$0xf]
        %v414 = vld [vmem:[%s2 + $0x18] sm:$0xf]
        %v415 = vld [vmem:[%s2 + $0x1c] sm:$0xf]
        %v416 = vld [vmem:[%s2 + $0x20] sm:$0xf]
        %v417 = vld [vmem:[%s2 + $0x24] sm:$0xf]
        %v418 = vld [vmem:[%s2 + $0x28] sm:$0xf]
        %v419 = vld [vmem:[%s2 + $0x2c] sm:$0xf]
        %v420 = vld [vmem:[%s2 + $0x30] sm:$0xf]
        %v421 = vld [vmem:[%s2 + $0x34] sm:$0xf]
        %v422 = vld [vmem:[%s2 + $0x38] sm:$0xf]
        %v423 = vld [vmem:[%s2 + $0x3c] sm:$0xf]
        %v440 = vunpack.c.l.b16 %v408
        %v441 = vunpack.c.l.b16 %v409
        %v442 = vunpack.c.l.b16 %v410
        %v443 = vunpack.c.l.b16 %v411
        %v444 = vunpack.c.l.b16 %v412
        %v445 = vunpack.c.l.b16 %v413
        %v446 = vunpack.c.l.b16 %v414
        %v447 = vunpack.c.l.b16 %v415
        %v448 = vunpack.c.l.b16 %v416
        %v449 = vunpack.c.l.b16 %v417
        %v450 = vunpack.c.l.b16 %v418
        %v451 = vunpack.c.l.b16 %v419
        %v452 = vunpack.c.l.b16 %v420
        %v453 = vunpack.c.l.b16 %v421
        %v454 = vunpack.c.l.b16 %v422
        %v455 = vunpack.c.l.b16 %v423
        %v456 = vpack.c.b16 %v441, %v440
        %v457 = vpack.c.b16 %v443, %v442
        %v458 = vpack.c.b16 %v445, %v444
        %v459 = vpack.c.b16 %v447, %v446
        %v460 = vpack.c.b16 %v449, %v448
        %v461 = vpack.c.b16 %v451, %v450
        %v462 = vpack.c.b16 %v453, %v452
        %v463 = vpack.c.b16 %v455, %v454
        %472 = vmatpush.bf16.msra.mxu0 %v463
        %473 = vmatpush.bf16.msra.mxu0 %v462
        %474 = vmatpush.bf16.msra.mxu0 %v461
        %475 = vmatpush.bf16.msra.mxu0 %v460
        %476 = vmatpush.bf16.msra.mxu0 %v459
        %477 = vmatpush.bf16.msra.mxu0 %v458
        %478 = vmatpush.bf16.msra.mxu0 %v457
        %479 = vmatpush.bf16.msra.mxu0 %v456
        %480 = vmatmul.bf16.gmra.mxu0 %v407
        %v481 = vpop.f32.mrf.mxu0
        %v482 = vadd.f32 0.0, %v481
        %v483 = vpop.f32.mrf.mxu0
        %484 = vdwg.mxu0
        %v485 = vadd.f32 %v406, %v482
        %v486 = vtanh.pop %v485
        %s487 = scalar_lea.vmem [#allocation3], 8
        %v488 = vld [vmem:[%s487] sm:$0xff]
        %v489 = vpack.c.bf16 %v486, %v486
        %490 = vmatpush.bf16.msra.mxu0 %v463
        %491 = vmatpush.bf16.msra.mxu0 %v462
        %492 = vmatpush.bf16.msra.mxu0 %v461
        %493 = vmatpush.bf16.msra.mxu0 %v460
        %494 = vmatpush.bf16.msra.mxu0 %v459
        %495 = vmatpush.bf16.msra.mxu0 %v458
        %496 = vmatpush.bf16.msra.mxu0 %v457
        %497 = vmatpush.bf16.msra.mxu0 %v456
        %498 = vmatmul.bf16.gmra.mxu0 %v489
        %v499 = vpop.f32.mrf.mxu0
        %v500 = vadd.f32 0.0, %v499
        %v501 = vpop.f32.mrf.mxu0
        %502 = vdwg.mxu0
        %v503 = vadd.f32 %v488, %v500
        %v504 = vtanh.pop %v503
        %505 = vst [vmem:[#allocation2] sm:$0xff] %v504
        %v506 = vld [vmem:[%s284] sm:$0xf]
        %v507 = vld [vmem:[%s284 + $0x4] sm:$0xf]
        %v508 = vld [vmem:[%s1] sm:$0xf]
        %v509 = vld [vmem:[%s1 + $0x4] sm:$0xf]
        %v510 = vld [vmem:[%s1 + $0x8] sm:$0xf]
        %v511 = vld [vmem:[%s1 + $0xc] sm:$0xf]
        %v512 = vld [vmem:[%s1 + $0x10] sm:$0xf]
        %v513 = vld [vmem:[%s1 + $0x14] sm:$0xf]
        %v514 = vld [vmem:[%s1 + $0x18] sm:$0xf]
        %v515 = vld [vmem:[%s1 + $0x1c] sm:$0xf]
        %v516 = vld [vmem:[%s1 + $0x20] sm:$0xf]
        %v517 = vld [vmem:[%s1 + $0x24] sm:$0xf]
        %v518 = vld [vmem:[%s1 + $0x28] sm:$0xf]
        %v519 = vld [vmem:[%s1 + $0x2c] sm:$0xf]
        %v520 = vld [vmem:[%s1 + $0x30] sm:$0xf]
        %v521 = vld [vmem:[%s1 + $0x34] sm:$0xf]
        %v522 = vld [vmem:[%s1 + $0x38] sm:$0xf]
        %v523 = vld [vmem:[%s1 + $0x3c] sm:$0xf]
        %v524 = vld [vmem:[%s3] sm:$0x1]
        %v526 = vperm.slane %v524, 0
        %v530 = vunpack.c.l.b16 %v506
        %v531 = vunpack.c.l.b16 %v507
        %v532 = vpack.c.b16 %v531, %v530
        %v550 = vunpack.c.l.b16 %v508
        %v551 = vunpack.c.l.b16 %v509
        %v552 = vunpack.c.l.b16 %v510
        %v553 = vunpack.c.l.b16 %v511
        %v554 = vunpack.c.l.b16 %v512
        %v555 = vunpack.c.l.b16 %v513
        %v556 = vunpack.c.l.b16 %v514
        %v557 = vunpack.c.l.b16 %v515
        %v558 = vunpack.c.l.b16 %v516
        %v559 = vunpack.c.l.b16 %v517
        %v560 = vunpack.c.l.b16 %v518
        %v561 = vunpack.c.l.b16 %v519
        %v562 = vunpack.c.l.b16 %v520
        %v563 = vunpack.c.l.b16 %v521
        %v564 = vunpack.c.l.b16 %v522
        %v565 = vunpack.c.l.b16 %v523
        %v566 = vpack.c.b16 %v551, %v550
        %v567 = vpack.c.b16 %v553, %v552
        %v568 = vpack.c.b16 %v555, %v554
        %v569 = vpack.c.b16 %v557, %v556
        %v570 = vpack.c.b16 %v559, %v558
        %v571 = vpack.c.b16 %v561, %v560
        %v572 = vpack.c.b16 %v563, %v562
        %v573 = vpack.c.b16 %v565, %v564
        %582 = vmatpush.bf16.msra.mxu0 %v573
        %583 = vmatpush.bf16.msra.mxu0 %v572
        %584 = vmatpush.bf16.msra.mxu0 %v571
        %585 = vmatpush.bf16.msra.mxu0 %v570
        %586 = vmatpush.bf16.msra.mxu0 %v569
        %587 = vmatpush.bf16.msra.mxu0 %v568
        %588 = vmatpush.bf16.msra.mxu0 %v567
        %589 = vmatpush.bf16.msra.mxu0 %v566
        %590 = vmatmul.bf16.gmra.mxu0 %v532
        %v591 = vpop.f32.mrf.mxu0
        %v592 = vadd.f32 %v526, %v591
        %v593 = vpop.f32.mrf.mxu0
        %v594 = vadd.f32 %v526, %v593
        %595 = vdwg.mxu0
        %596 = vst [vmem:[#allocation4] sm:$0xff] %v592
        %597 = vst [vmem:[#allocation4 + $0x8] sm:$0xff] %v594
      $region52: #{rnn_forward.1} parent=43 // pred_fallthru
        _
      %p598 = scmp.gt.s32.totalorder %s22, 0
      %p599 = scmp.eq.s32.totalorder %s400, 0
      %p600 = pnand %p598, %p599
      %p601 = pneg %p600
      // Predicated region
      $region53: #{rnn_forward.1} parent=43 // pred_check
        _
      $region54: #{rnn_forward.1} parent=43 // pred_check_branch
        %603 = sbr.rel (%p600) target = $region56
      $region55: #{rnn_forward.1} parent=43 // pred_region
        %v604 = vld [vmem:[#allocation2] sm:$0xff]
        %v605 = vld [vmem:[#allocation4] sm:$0xff]
        %v606 = vpack.c.bf16 %v604, %v604
        %v607 = vld [vmem:[%s2] sm:$0xf]
        %v608 = vld [vmem:[%s2 + $0x4] sm:$0xf]
        %v609 = vld [vmem:[%s2 + $0x8] sm:$0xf]
        %v610 = vld [vmem:[%s2 + $0xc] sm:$0xf]
        %v611 = vld [vmem:[%s2 + $0x10] sm:$0xf]
        %v612 = vld [vmem:[%s2 + $0x14] sm:$0xf]
        %v613 = vld [vmem:[%s2 + $0x18] sm:$0xf]
        %v614 = vld [vmem:[%s2 + $0x1c] sm:$0xf]
        %v615 = vld [vmem:[%s2 + $0x20] sm:$0xf]
        %v616 = vld [vmem:[%s2 + $0x24] sm:$0xf]
        %v617 = vld [vmem:[%s2 + $0x28] sm:$0xf]
        %v618 = vld [vmem:[%s2 + $0x2c] sm:$0xf]
        %v619 = vld [vmem:[%s2 + $0x30] sm:$0xf]
        %v620 = vld [vmem:[%s2 + $0x34] sm:$0xf]
        %v621 = vld [vmem:[%s2 + $0x38] sm:$0xf]
        %v622 = vld [vmem:[%s2 + $0x3c] sm:$0xf]
        %v639 = vunpack.c.l.b16 %v607
        %v640 = vunpack.c.l.b16 %v608
        %v641 = vunpack.c.l.b16 %v609
        %v642 = vunpack.c.l.b16 %v610
        %v643 = vunpack.c.l.b16 %v611
        %v644 = vunpack.c.l.b16 %v612
        %v645 = vunpack.c.l.b16 %v613
        %v646 = vunpack.c.l.b16 %v614
        %v647 = vunpack.c.l.b16 %v615
        %v648 = vunpack.c.l.b16 %v616
        %v649 = vunpack.c.l.b16 %v617
        %v650 = vunpack.c.l.b16 %v618
        %v651 = vunpack.c.l.b16 %v619
        %v652 = vunpack.c.l.b16 %v620
        %v653 = vunpack.c.l.b16 %v621
        %v654 = vunpack.c.l.b16 %v622
        %v655 = vpack.c.b16 %v640, %v639
        %v656 = vpack.c.b16 %v642, %v641
        %v657 = vpack.c.b16 %v644, %v643
        %v658 = vpack.c.b16 %v646, %v645
        %v659 = vpack.c.b16 %v648, %v647
        %v660 = vpack.c.b16 %v650, %v649
        %v661 = vpack.c.b16 %v652, %v651
        %v662 = vpack.c.b16 %v654, %v653
        %671 = vmatpush.bf16.msra.mxu0 %v662
        %672 = vmatpush.bf16.msra.mxu0 %v661
        %673 = vmatpush.bf16.msra.mxu0 %v660
        %674 = vmatpush.bf16.msra.mxu0 %v659
        %675 = vmatpush.bf16.msra.mxu0 %v658
        %676 = vmatpush.bf16.msra.mxu0 %v657
        %677 = vmatpush.bf16.msra.mxu0 %v656
        %678 = vmatpush.bf16.msra.mxu0 %v655
        %679 = vmatmul.bf16.gmra.mxu0 %v606
        %v680 = vpop.f32.mrf.mxu0
        %v681 = vadd.f32 0.0, %v680
        %v682 = vpop.f32.mrf.mxu0
        %683 = vdwg.mxu0
        %v684 = vadd.f32 %v605, %v681
        %v685 = vtanh.pop %v684
        %s686 = scalar_lea.vmem [#allocation4], 8
        %v687 = vld [vmem:[%s686] sm:$0xff]
        %v688 = vpack.c.bf16 %v685, %v685
        %689 = vmatpush.bf16.msra.mxu0 %v662
        %690 = vmatpush.bf16.msra.mxu0 %v661
        %691 = vmatpush.bf16.msra.mxu0 %v660
        %692 = vmatpush.bf16.msra.mxu0 %v659
        %693 = vmatpush.bf16.msra.mxu0 %v658
        %694 = vmatpush.bf16.msra.mxu0 %v657
        %695 = vmatpush.bf16.msra.mxu0 %v656
        %696 = vmatpush.bf16.msra.mxu0 %v655
        %697 = vmatmul.bf16.gmra.mxu0 %v688
        %v698 = vpop.f32.mrf.mxu0
        %v699 = vadd.f32 0.0, %v698
        %v700 = vpop.f32.mrf.mxu0
        %701 = vdwg.mxu0
        %v702 = vadd.f32 %v687, %v699
        %v703 = vtanh.pop %v702
        %704 = vst [vmem:[#allocation2] sm:$0xff] %v703
        %v705 = vld [vmem:[%s284] sm:$0xf]
        %v706 = vld [vmem:[%s284 + $0x4] sm:$0xf]
        %v707 = vld [vmem:[%s1] sm:$0xf]
        %v708 = vld [vmem:[%s1 + $0x4] sm:$0xf]
        %v709 = vld [vmem:[%s1 + $0x8] sm:$0xf]
        %v710 = vld [vmem:[%s1 + $0xc] sm:$0xf]
        %v711 = vld [vmem:[%s1 + $0x10] sm:$0xf]
        %v712 = vld [vmem:[%s1 + $0x14] sm:$0xf]
        %v713 = vld [vmem:[%s1 + $0x18] sm:$0xf]
        %v714 = vld [vmem:[%s1 + $0x1c] sm:$0xf]
        %v715 = vld [vmem:[%s1 + $0x20] sm:$0xf]
        %v716 = vld [vmem:[%s1 + $0x24] sm:$0xf]
        %v717 = vld [vmem:[%s1 + $0x28] sm:$0xf]
        %v718 = vld [vmem:[%s1 + $0x2c] sm:$0xf]
        %v719 = vld [vmem:[%s1 + $0x30] sm:$0xf]
        %v720 = vld [vmem:[%s1 + $0x34] sm:$0xf]
        %v721 = vld [vmem:[%s1 + $0x38] sm:$0xf]
        %v722 = vld [vmem:[%s1 + $0x3c] sm:$0xf]
        %v723 = vld [vmem:[%s3] sm:$0x1]
        %v725 = vperm.slane %v723, 0
        %v729 = vunpack.c.l.b16 %v705
        %v730 = vunpack.c.l.b16 %v706
        %v731 = vpack.c.b16 %v730, %v729
        %v749 = vunpack.c.l.b16 %v707
        %v750 = vunpack.c.l.b16 %v708
        %v751 = vunpack.c.l.b16 %v709
        %v752 = vunpack.c.l.b16 %v710
        %v753 = vunpack.c.l.b16 %v711
        %v754 = vunpack.c.l.b16 %v712
        %v755 = vunpack.c.l.b16 %v713
        %v756 = vunpack.c.l.b16 %v714
        %v757 = vunpack.c.l.b16 %v715
        %v758 = vunpack.c.l.b16 %v716
        %v759 = vunpack.c.l.b16 %v717
        %v760 = vunpack.c.l.b16 %v718
        %v761 = vunpack.c.l.b16 %v719
        %v762 = vunpack.c.l.b16 %v720
        %v763 = vunpack.c.l.b16 %v721
        %v764 = vunpack.c.l.b16 %v722
        %v765 = vpack.c.b16 %v750, %v749
        %v766 = vpack.c.b16 %v752, %v751
        %v767 = vpack.c.b16 %v754, %v753
        %v768 = vpack.c.b16 %v756, %v755
        %v769 = vpack.c.b16 %v758, %v757
        %v770 = vpack.c.b16 %v760, %v759
        %v771 = vpack.c.b16 %v762, %v761
        %v772 = vpack.c.b16 %v764, %v763
        %781 = vmatpush.bf16.msra.mxu0 %v772
        %782 = vmatpush.bf16.msra.mxu0 %v771
        %783 = vmatpush.bf16.msra.mxu0 %v770
        %784 = vmatpush.bf16.msra.mxu0 %v769
        %785 = vmatpush.bf16.msra.mxu0 %v768
        %786 = vmatpush.bf16.msra.mxu0 %v767
        %787 = vmatpush.bf16.msra.mxu0 %v766
        %788 = vmatpush.bf16.msra.mxu0 %v765
        %789 = vmatmul.bf16.gmra.mxu0 %v731
        %v790 = vpop.f32.mrf.mxu0
        %v791 = vadd.f32 %v725, %v790
        %v792 = vpop.f32.mrf.mxu0
        %v793 = vadd.f32 %v725, %v792
        %794 = vdwg.mxu0
        %795 = vst [vmem:[#allocation3] sm:$0xff] %v791
        %796 = vst [vmem:[#allocation3 + $0x8] sm:$0xff] %v793
      $region56: #{rnn_forward.1} parent=43 // pred_fallthru
        _
      %p797 = scmp.eq.s32.totalorder %s22, 4
      // Predicated region
      $region57: #{rnn_forward.1} parent=43 // pred_check
        %p798 = pneg %p797
      $region58: #{rnn_forward.1} parent=43 // pred_check_branch
        %800 = sbr.rel (%p798) target = $region60
      $region59: #{rnn_forward.1} parent=43 // pred_region
        %v801 = vld [vmem:[#allocation2] sm:$0xff]
        %v802 = vpack.c.bf16 %v801, %v801
        %v803 = vld [vmem:[%s4] sm:$0xf]
        %v804 = vld [vmem:[%s4 + $0x4] sm:$0xf]
        %v805 = vld [vmem:[%s4 + $0x8] sm:$0xf]
        %v806 = vld [vmem:[%s4 + $0xc] sm:$0xf]
        %v807 = vld [vmem:[%s4 + $0x10] sm:$0xf]
        %v808 = vld [vmem:[%s4 + $0x14] sm:$0xf]
        %v809 = vld [vmem:[%s4 + $0x18] sm:$0xf]
        %v810 = vld [vmem:[%s4 + $0x1c] sm:$0xf]
        %v811 = vld [vmem:[%s4 + $0x20] sm:$0xf]
        %v812 = vld [vmem:[%s4 + $0x24] sm:$0xf]
        %v813 = vld [vmem:[%s4 + $0x28] sm:$0xf]
        %v814 = vld [vmem:[%s4 + $0x2c] sm:$0xf]
        %v815 = vld [vmem:[%s4 + $0x30] sm:$0xf]
        %v816 = vld [vmem:[%s4 + $0x34] sm:$0xf]
        %v817 = vld [vmem:[%s4 + $0x38] sm:$0xf]
        %v818 = vld [vmem:[%s4 + $0x3c] sm:$0xf]
        %v819 = vld [vmem:[%s5] sm:$0x1]
        %v821 = vperm.slane %v819, 0
        %v839 = vunpack.c.l.b16 %v803
        %v840 = vunpack.c.l.b16 %v804
        %v841 = vunpack.c.l.b16 %v805
        %v842 = vunpack.c.l.b16 %v806
        %v843 = vunpack.c.l.b16 %v807
        %v844 = vunpack.c.l.b16 %v808
        %v845 = vunpack.c.l.b16 %v809
        %v846 = vunpack.c.l.b16 %v810
        %v847 = vunpack.c.l.b16 %v811
        %v848 = vunpack.c.l.b16 %v812
        %v849 = vunpack.c.l.b16 %v813
        %v850 = vunpack.c.l.b16 %v814
        %v851 = vunpack.c.l.b16 %v815
        %v852 = vunpack.c.l.b16 %v816
        %v853 = vunpack.c.l.b16 %v817
        %v854 = vunpack.c.l.b16 %v818
        %v855 = vpack.c.b16 %v840, %v839
        %v856 = vpack.c.b16 %v842, %v841
        %v857 = vpack.c.b16 %v844, %v843
        %v858 = vpack.c.b16 %v846, %v845
        %v859 = vpack.c.b16 %v848, %v847
        %v860 = vpack.c.b16 %v850, %v849
        %v861 = vpack.c.b16 %v852, %v851
        %v862 = vpack.c.b16 %v854, %v853
        %871 = vmatpush.bf16.msra.mxu0 %v862
        %872 = vmatpush.bf16.msra.mxu0 %v861
        %873 = vmatpush.bf16.msra.mxu0 %v860
        %874 = vmatpush.bf16.msra.mxu0 %v859
        %875 = vmatpush.bf16.msra.mxu0 %v858
        %876 = vmatpush.bf16.msra.mxu0 %v857
        %877 = vmatpush.bf16.msra.mxu0 %v856
        %878 = vmatpush.bf16.msra.mxu0 %v855
        %879 = vmatmul.bf16.gmra.mxu0 %v802
        %v880 = vpop.f32.mrf.mxu0
        %v881 = vadd.f32 %v821, %v880
        %v882 = vpop.f32.mrf.mxu0
        %883 = vdwg.mxu0
        %884 = vst [vmem:[%s291] sm:$0xff] %v881
      $region60: #{rnn_forward.1} parent=43 // pred_fallthru
        _
      %p885 = scmp.lt.s32.totalorder %s21, 0
      %s886 = scalar_select %p885, %s21, 0
      %s887 = smul.addr %s886, 8
      %s888 = scalar_lea.vmem %s6, %s887
      // Predicated region
      $region61: #{rnn_forward.1} parent=43 // pred_check
        %p889 = pneg %p184
      $region62: #{rnn_forward.1} parent=43 // pred_check_branch
        %891 = sbr.rel (%p889) target = $region64
      $region63: #{rnn_forward.1} parent=43 // pred_region
        _
      $region64: #{rnn_forward.1} parent=43 // pred_fallthru
        _
      // Predicated region
      $region65: #{rnn_forward.1} parent=43 // pred_check
        %p892 = pneg %p184
      $region66: #{rnn_forward.1} parent=43 // pred_check_branch
        %894 = sbr.rel (%p892) target = $region68
      $region67: #{rnn_forward.1} parent=43 // pred_region
        %p895 = scmp.lt.s32.totalorder %s21, 0
        %s896 = scalar_select %p895, %s21, 0
        %s897 = smul.addr %s896, 8
        %s898 = scalar_lea.vmem %s6, %s897
      $region68: #{rnn_forward.1} parent=43 // pred_fallthru
        _
    $region44: #{rnn_forward.1} parent=5 // pred_fallthru
      _
    %p899 = scmp.le.s32.totalorder 2, %s12
    // Predicated region
    $region69: #{rnn_forward.1} parent=5 // pred_check
      %p900 = pneg %p899
    $region70: #{rnn_forward.1} parent=5 // pred_check_branch
      %902 = sbr.rel (%p900) target = $region72
    $region71: #{rnn_forward.1} parent=5 // pred_region
      %s903 = ssub.s32 %s12, 2
    $region72: #{rnn_forward.1} parent=5 // pred_fallthru
      _
  $region6: #{rnn_forward.1} parent=0 // loop_footer
    %s16 = sadd.s32 1, %s12
  $region7: #{rnn_forward.1} parent=0 // loop_footer_branch
    %11 = sbr.rel target = $region3
  $region8: #{rnn_forward.1} parent=0 // loop_exit
    _

</llo_original>
